<compile_context>
chip_gen: v5e
topology: v5e:2x2
jax: 0.10.0
libtpu: 0.0.40
codegen_flags: <defaults>
</compile_context>

<pallas_src>
import functools

import jax
import jax.numpy as jnp
from jax.experimental import pallas as pl
from jax.experimental.pallas import tpu as pltpu

_LANE = 128
_FUSED_VMEM_BUDGET = 24 << 20      # conservative vs v7x 64 MiB physical VMEM
_STREAM_BLOCK_TARGET = 2 << 20     # ~2 MiB x-blocks for the streaming fallback


# --------------------------------------------------------------------------- #
# Fused single-pass kernel: one (1, C, HW) slab per grid step.
# --------------------------------------------------------------------------- #
def _se_fused_kernel(x_ref, w1t_ref, w2_ref, o_ref, *, inv_hw):
    # x: (1, C, HW); w1t: (C, Cr) (= W1.T); w2: (C, Cr) (original orientation).
    xf = x_ref[...].astype(jnp.float32)
    # Lane reduce with keepdims keeps C on the sublane axis -> no relayout.
    ssum = jnp.sum(xf, axis=-1, keepdims=True)                  # (1, C, 1)
    avg = ssum[0] * inv_hw                                      # (C, 1)
    # fc1: h[r] = sum_c W1[r, c] * avg[c]   (sublane reduce, XLU)
    h = jnp.sum(w1t_ref[...].astype(jnp.float32) * avg, axis=0, keepdims=True)
    h = jnp.maximum(h, 0.0)                                     # (1, Cr)
    # fc2: y[c] = sum_r W2[c, r] * h[r]     (lane reduce, C stays on sublanes)
    y = jnp.sum(w2_ref[...].astype(jnp.float32) * h, axis=1, keepdims=True)
    gate = jax.nn.sigmoid(y)[None]                              # (1, C, 1) f32
    o_ref[...] = (xf * gate).astype(o_ref.dtype)


# --------------------------------------------------------------------------- #
# Fallback pass 1: streaming per-channel sums with a (1, C, 1) f32 accumulator.
# --------------------------------------------------------------------------- #
def _se_pool_kernel(x_ref, sums_ref, acc_ref, *, hw_total, hw_tile, needs_mask):
    hw_i = pl.program_id(1)
    last = pl.num_programs(1) - 1

    @pl.when(hw_i == 0)
    def _init():
        acc_ref[...] = jnp.zeros_like(acc_ref)

    def _accum(masked):
        x = x_ref[...].astype(jnp.float32)                      # (1, C, hw_tile)
        if masked:
            lane = jax.lax.broadcasted_iota(jnp.int32, x.shape, 2)
            x = jnp.where((hw_i * hw_tile + lane) < hw_total, x, 0.0)
        # Per-chunk lane reduce (XLU); only C f32 values hit the accumulator.
        acc_ref[...] += jnp.sum(x, axis=-1, keepdims=True)

    if needs_mask:
        @pl.when(hw_i != last)
        def _body():
            _accum(False)

        @pl.when(hw_i == last)
        def _tail():
            _accum(True)
    else:
        _accum(False)

    @pl.when(hw_i == last)
    def _finalize():
        sums_ref[...] = acc_ref[...]


# --------------------------------------------------------------------------- #
# Fallback pass 2: out = x * gate (gate (1, C, 1) f32, lane-broadcast over HW).
# --------------------------------------------------------------------------- #
def _se_scale_kernel(x_ref, g_ref, o_ref):
    o_ref[...] = (x_ref[...].astype(jnp.float32) * g_ref[...]).astype(o_ref.dtype)


def _pick_hw_tile(hw, c, itemsize):
    """Lane-aligned HW chunk targeting ~_STREAM_BLOCK_TARGET bytes per block."""
    per_lane = max(1, c * itemsize)
    tile = max(_LANE, (_STREAM_BLOCK_TARGET // per_lane) // _LANE * _LANE)
    return int(min(tile, hw))


def _compiler_params(semantics, needed_bytes):
    kwargs = dict(dimension_semantics=semantics)
    if needed_bytes > (14 << 20):
        # Above the smallest scoped-VMEM default (v5e: 16 MiB) -> be explicit,
        # but stay well under v7x's 64 MiB physical VMEM.
        kwargs["vmem_limit_bytes"] = int(min(needed_bytes + (8 << 20), 48 << 20))
    return pltpu.CompilerParams(**kwargs)


def se_layer(x_nchw, w1, w2, *, force_two_pass=False, hw_tile=None):
    """SELayer forward.  x: (B, C, H, W); w1: (C//r, C); w2: (C, C//r)."""
    B, C, H, W = x_nchw.shape
    Cr = w1.shape[0]
    HW = H * W
    itemsize = jnp.dtype(x_nchw.dtype).itemsize
    x_flat = x_nchw.reshape(B, C, HW)

    slab_bytes = C * HW * itemsize
    # double-buffered in + out blocks + one f32 working copy + weights + slack
    fused_bytes = 4 * slab_bytes + C * HW * 4 + 2 * C * Cr * 4 + (64 << 10)

    if not force_two_pass and fused_bytes <= _FUSED_VMEM_BUDGET:
        # ---- Fused single pass: grid=(B,), per-batch slab resident in VMEM.
        # TODO(synk): for B==1 on v7x both TensorCores could split the HW
        # reduction; with grid=(B,) only one core does the work.
        w1t = jnp.transpose(w1)                                  # (C, Cr)
        out = pl.pallas_call(
            functools.partial(_se_fused_kernel, inv_hw=1.0 / float(HW)),
            out_shape=jax.ShapeDtypeStruct((B, C, HW), x_nchw.dtype),
            grid=(B,),
            in_specs=[
                pl.BlockSpec((1, C, HW), lambda b: (b, 0, 0)),
                pl.BlockSpec((C, Cr), lambda b: (0, 0)),
                pl.BlockSpec((C, Cr), lambda b: (0, 0)),
            ],
            out_specs=pl.BlockSpec((1, C, HW), lambda b: (b, 0, 0)),
            compiler_params=_compiler_params(("parallel",), fused_bytes),
        )(x_flat, w1t, w2)
        return out.reshape(B, C, H, W)

    # ---- Fallback: streaming two-pass path for slabs too big for VMEM.
    if hw_tile is None:
        hw_tile = _pick_hw_tile(HW, C, itemsize)
    hw_tile = int(min(hw_tile, HW))
    n_hw = pl.cdiv(HW, hw_tile)
    needs_mask = (HW % hw_tile) != 0
    block_bytes = C * hw_tile * itemsize

    # Pass 1: streaming per-channel sums (only B*C f32 values come out).
    sums = pl.pallas_call(
        functools.partial(_se_pool_kernel, hw_total=HW, hw_tile=hw_tile,
                          needs_mask=needs_mask),
        out_shape=jax.ShapeDtypeStruct((B, C, 1), jnp.float32),
        grid=(B, n_hw),
        in_specs=[pl.BlockSpec((1, C, hw_tile), lambda b, k: (b, 0, k))],
        out_specs=pl.BlockSpec((1, C, 1), lambda b, k: (b, 0, 0)),
        scratch_shapes=[pltpu.VMEM((1, C, 1), jnp.float32)],
        compiler_params=_compiler_params(("parallel", "arbitrary"),
                                         2 * block_bytes + C * hw_tile * 4),
    )(x_flat)

    # Tiny FC epilogue for all batches as one XLA op (B*C values; negligible).
    avg = sums[:, :, 0] * (1.0 / float(HW))                      # (B, C) f32
    h = jnp.maximum(avg @ w1.T.astype(jnp.float32), 0.0)
    gate = jax.nn.sigmoid(h @ w2.T.astype(jnp.float32))          # (B, C) f32
    gate3 = gate[:, :, None]                                     # (B, C, 1) f32

    # Pass 2: out = x * gate (both grid axes parallel; pure bandwidth pass).
    out = pl.pallas_call(
        _se_scale_kernel,
        out_shape=jax.ShapeDtypeStruct((B, C, HW), x_nchw.dtype),
        grid=(B, n_hw),
        in_specs=[
            pl.BlockSpec((1, C, hw_tile), lambda b, k: (b, 0, k)),
            pl.BlockSpec((1, C, 1), lambda b, k: (b, 0, 0)),
        ],
        out_specs=pl.BlockSpec((1, C, hw_tile), lambda b, k: (b, 0, k)),
        compiler_params=_compiler_params(("parallel", "parallel"),
                                         4 * block_bytes + C * hw_tile * 4),
    )(x_flat, gate3)

    return out.reshape(B, C, H, W)


def reference(x, w1, w2):
    # Pure-JAX reference mirroring the PyTorch SELayer forward.
    avg = jnp.mean(x.astype(jnp.float32), axis=(2, 3))           # (B, C)
    h = jnp.maximum(avg @ w1.T.astype(jnp.float32), 0.0)
    y = jax.nn.sigmoid(h @ w2.T.astype(jnp.float32))             # (B, C)
    return (x.astype(jnp.float32) * y[:, :, None, None]).astype(x.dtype)


if __name__ == "__main__":
    key = jax.random.PRNGKey(0)
    k_x, k_w1, k_w2 = jax.random.split(key, 3)

    B, C, H, W = 2, 64, 20, 20        # channel = 64
    reduction = 16
    Cr = C // reduction               # 4

    x = jax.random.normal(k_x, (B, C, H, W), dtype=jnp.float32)
    # nn.Linear(bias=False) weights: (out_features, in_features)
    w1 = 0.1 * jax.random.normal(k_w1, (Cr, C), dtype=jnp.float32)
    w2 = 0.1 * jax.random.normal(k_w2, (C, Cr), dtype=jnp.float32)

    ref = reference(x, w1, w2)

    # Primary fused path (per-batch slab resident in VMEM).
    out_fused = jax.block_until_ready(se_layer(x, w1, w2))
    assert out_fused.shape == (B, C, H, W)
    assert jnp.allclose(out_fused, ref, atol=1e-5, rtol=1e-5), \
        float(jnp.max(jnp.abs(out_fused - ref)))

    # Streaming fallback path (forced; hw_tile=128 -> 4 chunks, masked tail).
    out_stream = jax.block_until_ready(
        se_layer(x, w1, w2, force_two_pass=True, hw_tile=128))
    assert jnp.allclose(out_stream, ref, atol=1e-5, rtol=1e-5), \
        float(jnp.max(jnp.abs(out_stream - ref)))

    print("KERNEL_OK")
</pallas_src>

<mosaic_0001>
module attributes {stable_mosaic.version = 11 : i64} {
  func.func @_se_fused_kernel(%arg0: i32, %arg1: memref<1x64x400xf32, #tpu.memory_space<vmem>>, %arg2: memref<64x4xf32, #tpu.memory_space<vmem>>, %arg3: memref<64x4xf32, #tpu.memory_space<vmem>>, %arg4: memref<1x64x400xf32, #tpu.memory_space<vmem>>) attributes {dimension_semantics = [#tpu.dimension_semantics<parallel>], iteration_bounds = array<i64: 2>, scalar_prefetch = 0 : i64, scratch_operands = 0 : i64, tpu.core_type = #tpu.core_type<tc>, window_params = [{transform_indices = @transform_0, window_bounds = array<i64: 1, 64, 400>}, {pipeline_mode = #tpu.pipeline_mode<synchronous>, transform_indices = @transform_1, window_bounds = array<i64: 64, 4>}, {pipeline_mode = #tpu.pipeline_mode<synchronous>, transform_indices = @transform_2, window_bounds = array<i64: 64, 4>}, {transform_indices = @transform_3, window_bounds = array<i64: 1, 64, 400>}]} {
    %c0 = arith.constant 0 : index
    %c0_0 = arith.constant 0 : index
    %c0_1 = arith.constant 0 : index
    %0 = vector.load %arg1[%c0, %c0_0, %c0_1] : memref<1x64x400xf32, #tpu.memory_space<vmem>>, vector<1x64x400xf32>
    %cst = arith.constant dense<0.000000e+00> : vector<1x64xf32>
    %1 = vector.multi_reduction <add>, %0, %cst [2] : vector<1x64x400xf32> to vector<1x64xf32>
    %2 = vector.shape_cast %1 : vector<1x64xf32> to vector<1x64x1xf32>
    %3 = vector.shape_cast %2 : vector<1x64x1xf32> to vector<64x1xf32>
    %cst_2 = arith.constant 2.500000e-03 : f32
    %4 = vector.broadcast %cst_2 : f32 to vector<64x1xf32>
    %5 = arith.mulf %3, %4 : vector<64x1xf32>
    %c0_3 = arith.constant 0 : index
    %c0_4 = arith.constant 0 : index
    %6 = vector.load %arg2[%c0_3, %c0_4] : memref<64x4xf32, #tpu.memory_space<vmem>>, vector<64x4xf32>
    %7 = vector.broadcast %5 : vector<64x1xf32> to vector<64x4xf32>
    %8 = arith.mulf %6, %7 : vector<64x4xf32>
    %cst_5 = arith.constant dense<0.000000e+00> : vector<4xf32>
    %9 = vector.multi_reduction <add>, %8, %cst_5 [0] : vector<64x4xf32> to vector<4xf32>
    %10 = vector.shape_cast %9 : vector<4xf32> to vector<1x4xf32>
    %cst_6 = arith.constant 0.000000e+00 : f32
    %11 = vector.broadcast %cst_6 : f32 to vector<1x4xf32>
    %12 = arith.maximumf %10, %11 : vector<1x4xf32>
    %c0_7 = arith.constant 0 : index
    %c0_8 = arith.constant 0 : index
    %13 = vector.load %arg3[%c0_7, %c0_8] : memref<64x4xf32, #tpu.memory_space<vmem>>, vector<64x4xf32>
    %14 = vector.broadcast %12 : vector<1x4xf32> to vector<64x4xf32>
    %15 = arith.mulf %13, %14 : vector<64x4xf32>
    %cst_9 = arith.constant dense<0.000000e+00> : vector<64xf32>
    %16 = vector.multi_reduction <add>, %15, %cst_9 [1] : vector<64x4xf32> to vector<64xf32>
    %17 = vector.shape_cast %16 : vector<64xf32> to vector<64x1xf32>
    %18 = arith.negf %17 : vector<64x1xf32>
    %19 = math.exp %18 : vector<64x1xf32>
    %cst_10 = arith.constant 1.000000e+00 : f32
    %20 = vector.broadcast %cst_10 : f32 to vector<64x1xf32>
    %21 = arith.addf %20, %19 : vector<64x1xf32>
    %22 = arith.divf %20, %21 : vector<64x1xf32>
    %23 = vector.shape_cast %22 : vector<64x1xf32> to vector<1x64x1xf32>
    %24 = vector.broadcast %23 : vector<1x64x1xf32> to vector<1x64x400xf32>
    %25 = arith.mulf %0, %24 : vector<1x64x400xf32>
    %c0_11 = arith.constant 0 : index
    %c0_12 = arith.constant 0 : index
    %c0_13 = arith.constant 0 : index
    %26 = vector.load %arg4[%c0_11, %c0_12, %c0_13] : memref<1x64x400xf32, #tpu.memory_space<vmem>>, vector<1x64x400xf32>
    tpu.vector_store %arg4[%c0_11, %c0_12, %c0_13], %25 {strides = array<i32>} : memref<1x64x400xf32, #tpu.memory_space<vmem>>, vector<1x64x400xf32>,
    return
  }
  func.func @transform_0(%arg0: i32) -> (i32, i32, i32) {
    %c0_i32 = arith.constant 0 : i32
    %c0_i32_0 = arith.constant 0 : i32
    %c0_i32_1 = arith.constant 0 : i32
    return %arg0, %c0_i32, %c0_i32_0 : i32, i32, i32
  }
  func.func @transform_1(%arg0: i32) -> (i32, i32) {
    %c0_i32 = arith.constant 0 : i32
    %c0_i32_0 = arith.constant 0 : i32
    %c0_i32_1 = arith.constant 0 : i32
    return %c0_i32, %c0_i32_0 : i32, i32
  }
  func.func @transform_2(%arg0: i32) -> (i32, i32) {
    %c0_i32 = arith.constant 0 : i32
    %c0_i32_0 = arith.constant 0 : i32
    %c0_i32_1 = arith.constant 0 : i32
    return %c0_i32, %c0_i32_0 : i32, i32
  }
  func.func @transform_3(%arg0: i32) -> (i32, i32, i32) {
    %c0_i32 = arith.constant 0 : i32
    %c0_i32_0 = arith.constant 0 : i32
    %c0_i32_1 = arith.constant 0 : i32
    return %arg0, %c0_i32, %c0_i32_0 : i32, i32, i32
  }
}

</mosaic_0001>

<llo_original>
// kernel: tpu_custom_call.1
$region0: #{tpu_custom_call.1}
  #allocation0 [shape = 'u32[]', space=smem, size = 0x4, offset = 0x4, fixed_abs, tag = 'smem constant byte address 0x4 - core index']
  #allocation1 [shape = 'u32[72,128]{1,0:T(1,128)}', space=vmem, size = 0x9000, scoped, tag = 'internal scratch']
  %s0 = inlined_call_operand.hbm [shape: f32[2,64,400], index: 0, kind: input, shape index: {}]
  %s1 = inlined_call_operand.vmem [shape: f32[64,4], index: 1, kind: input, shape index: {}]
  %s2 = inlined_call_operand.vmem [shape: f32[64,4], index: 2, kind: input, shape index: {}]
  %s3 = inlined_call_operand.hbm [shape: f32[2,64,400], index: 3, kind: output, shape index: {}]
  %s4 = sld [smem:[#allocation0]]
  $region49: #{tpu_custom_call.1} parent=0
    _
  %s6 = ssub.s32 1, %s4
  %s7 = scalar_select 0, %s6, %s4
  $region1: #{tpu_custom_call.1} parent=0
    #allocation2 [shape = 'u8[262144]{0}', space=vmem, size = 0x40000, scoped, tag = 'input window, operand 0']
    #allocation3 [shape = 's32[2]{0}', space=sflag, size = 0x8, scoped, tag = 'scoped memory for tpu_custom_call.1']
    #allocation4 [shape = 's32[2]{0}', space=sflag, size = 0x8, scoped, tag = 'scoped memory for tpu_custom_call.1']
    #allocation5 [shape = 'u8[262144]{0}', space=vmem, size = 0x40000, scoped, tag = 'output window, operand 0']
    %8 = vsyncpa [#allocation3], 0
    %s9 = scalar_lea.sflag [#allocation3], 1
    %10 = vsyncpa %s9, 0
    %11 = vsyncpa [#allocation4], 0
    %s12 = scalar_lea.sflag [#allocation4], 1
    %13 = vsyncpa %s12, 0
    loop: start=0, step=1, limit=4
    $region2: #{tpu_custom_call.1} parent=1 // loop_pre_header
      _
    $region3: #{tpu_custom_call.1} parent=1 // loop_header
      %s15 = sphi 0, %s19
      %p16 = scmp.ge.s32.totalorder %s15, 4
      %s25 = sphi 0, %s27
      %s28 = sphi 0, %s25
      %s29 = sphi 0, %s28
      %s45 = sphi 0, %s29
      %s49 = sphi 0, %s49
      %s51 = sphi 0, %s49
      %s52 = sphi 0, %s51
      %s66 = sphi 0, %s52
      %s70 = sphi 0, %s70
      %s72 = sphi 0, %s70
      %s73 = sphi 0, %s72
      %s87 = sphi 0, %s73
      %s93 = sphi 0, %s95
      %s96 = sphi 0, %s93
      %s97 = sphi 0, %s96
      %s113 = sphi 0, %s97
    $region4: #{tpu_custom_call.1} parent=1 // loop_header_branch
      %18 = sbr.rel (%p16) target = $region8
    $region5: #{tpu_custom_call.1} parent=1 // loop_body
      %s20 = ssub.s32 %s15, 1
      %s21 = ssub.s32 %s15, 2
      %s22 = sadd.s32 %s15, 1
      %s23 = ssub.s32 %s15, %s22
      %p24 = scmp.eq.s32.totalorder %s23, 0
      %s26 = sadd.s32 %s25, 1
      %s27 = scalar_select %p24, %s25, %s26
      %p30 = pneg %p24
      %p31 = scmp.eq.s32.totalorder %s15, 1
      %p32 = por %p30, %p31
      %p33 = scmp.ne.s32.totalorder %s25, %s28
      %p34 = scmp.eq.s32.totalorder %s15, 0
      %p35 = por %p33, %p34
      %p36 = scmp.ne.s32.totalorder %s25, %s28
      %p37 = scmp.eq.s32.totalorder %s20, 1
      %p38 = por %p36, %p37
      %p39 = scmp.ne.s32.totalorder %s28, %s29
      %p40 = scmp.eq.s32.totalorder %s20, 0
      %p41 = por %p39, %p40
      %p42 = scmp.ne.s32.totalorder %s28, %s29
      %p43 = scmp.eq.s32.totalorder %s21, 1
      %p44 = por %p42, %p43
      %p46 = scmp.ne.s32.totalorder %s29, %s45
      %p47 = scmp.eq.s32.totalorder %s21, 0
      %p48 = por %p46, %p47
      %s50 = sadd.s32 %s49, 1
      %p53 = scmp.eq.s32.totalorder %s15, 1
      %p54 = scmp.ne.s32.totalorder %s49, %s51
      %p55 = scmp.eq.s32.totalorder %s15, 0
      %p56 = por %p54, %p55
      %p57 = scmp.ne.s32.totalorder %s49, %s51
      %p58 = scmp.eq.s32.totalorder %s20, 1
      %p59 = por %p57, %p58
      %p60 = scmp.ne.s32.totalorder %s51, %s52
      %p61 = scmp.eq.s32.totalorder %s20, 0
      %p62 = por %p60, %p61
      %p63 = scmp.ne.s32.totalorder %s51, %s52
      %p64 = scmp.eq.s32.totalorder %s21, 1
      %p65 = por %p63, %p64
      %p67 = scmp.ne.s32.totalorder %s52, %s66
      %p68 = scmp.eq.s32.totalorder %s21, 0
      %p69 = por %p67, %p68
      %s71 = sadd.s32 %s70, 1
      %p74 = scmp.eq.s32.totalorder %s15, 1
      %p75 = scmp.ne.s32.totalorder %s70, %s72
      %p76 = scmp.eq.s32.totalorder %s15, 0
      %p77 = por %p75, %p76
      %p78 = scmp.ne.s32.totalorder %s70, %s72
      %p79 = scmp.eq.s32.totalorder %s20, 1
      %p80 = por %p78, %p79
      %p81 = scmp.ne.s32.totalorder %s72, %s73
      %p82 = scmp.eq.s32.totalorder %s20, 0
      %p83 = por %p81, %p82
      %p84 = scmp.ne.s32.totalorder %s72, %s73
      %p85 = scmp.eq.s32.totalorder %s21, 1
      %p86 = por %p84, %p85
      %p88 = scmp.ne.s32.totalorder %s73, %s87
      %p89 = scmp.eq.s32.totalorder %s21, 0
      %p90 = por %p88, %p89
      %s91 = ssub.s32 %s15, %s22
      %p92 = scmp.eq.s32.totalorder %s91, 0
      %s94 = sadd.s32 %s93, 1
      %s95 = scalar_select %p92, %s93, %s94
      %p98 = pneg %p92
      %p99 = scmp.eq.s32.totalorder %s15, 1
      %p100 = por %p98, %p99
      %p101 = scmp.ne.s32.totalorder %s93, %s96
      %p102 = scmp.eq.s32.totalorder %s15, 0
      %p103 = por %p101, %p102
      %p104 = scmp.ne.s32.totalorder %s93, %s96
      %p105 = scmp.eq.s32.totalorder %s20, 1
      %p106 = por %p104, %p105
      %p107 = scmp.ne.s32.totalorder %s96, %s97
      %p108 = scmp.eq.s32.totalorder %s20, 0
      %p109 = por %p107, %p108
      %p110 = scmp.ne.s32.totalorder %s96, %s97
      %p111 = scmp.eq.s32.totalorder %s21, 1
      %p112 = por %p110, %p111
      %p114 = scmp.ne.s32.totalorder %s97, %s113
      %p115 = scmp.eq.s32.totalorder %s21, 0
      %p116 = por %p114, %p115
      %p117 = scmp.le.s32.totalorder 1, %s15
      %p118 = scmp.lt.s32.totalorder %s15, 3
      %p119 = pnand %p117, %p118
      %p120 = pneg %p119
      // Predicated region
      $region9: #{tpu_custom_call.1} parent=5 // pred_check
        _
      $region10: #{tpu_custom_call.1} parent=5 // pred_check_branch
        %122 = sbr.rel (%p119) target = $region12
      $region11: #{tpu_custom_call.1} parent=5 // pred_region
        %s123 = ssub.s32 %s15, 1
        // Predicated region
        $region13: #{tpu_custom_call.1} parent=11 // pred_check
          %p124 = pneg %p62
        $region14: #{tpu_custom_call.1} parent=11 // pred_check_branch
          %126 = sbr.rel (%p124) target = $region16
        $region15: #{tpu_custom_call.1} parent=11 // pred_region
          _
        $region16: #{tpu_custom_call.1} parent=11 // pred_fallthru
          _
        // Predicated region
        $region17: #{tpu_custom_call.1} parent=11 // pred_check
          %p127 = pneg %p83
        $region18: #{tpu_custom_call.1} parent=11 // pred_check_branch
          %129 = sbr.rel (%p127) target = $region20
        $region19: #{tpu_custom_call.1} parent=11 // pred_region
          _
        $region20: #{tpu_custom_call.1} parent=11 // pred_fallthru
          _
      $region12: #{tpu_custom_call.1} parent=5 // pred_fallthru
        _
      %p130 = scmp.lt.s32.totalorder %s15, 2
      // Predicated region
      $region21: #{tpu_custom_call.1} parent=5 // pred_check
        %p131 = pneg %p130
      $region22: #{tpu_custom_call.1} parent=5 // pred_check_branch
        %133 = sbr.rel (%p131) target = $region24
      $region23: #{tpu_custom_call.1} parent=5 // pred_region
        // Predicated region
        $region25: #{tpu_custom_call.1} parent=23 // pred_check
          %p134 = pneg %p35
        $region26: #{tpu_custom_call.1} parent=23 // pred_check_branch
          %136 = sbr.rel (%p134) target = $region28
        $region27: #{tpu_custom_call.1} parent=23 // pred_region
          %s137 = sand.u32 %s25, 1
          %s138 = scalar_lea.sflag [#allocation3], %s137
          %s139 = sand.u32 %s25, 1
          %s140 = smul.addr %s139, 256
          %s141 = scalar_lea.vmem [#allocation2], %s140
          %143 = vsyncadd %s138, 0
          %s144 = smul.addr %s15, 32
          %s145 = smul.addr %s144, 8
          %s146 = scalar_lea.hbm %s0, %s145
          %s147 = sshll.u32 %s146, 4
          %s148 = int_to_ptr.hbm [resolvable:$true] %s147
          %s149 = sshll.u32 %s141, 4
          %s150 = int_to_ptr.vmem [resolvable:$true] %s149
          %155 = dma.hbm_to_vmem [thread:$0]  %s148, 4096, %s150, %s138, 512, 512, 32
        $region28: #{tpu_custom_call.1} parent=23 // pred_fallthru
          _
      $region24: #{tpu_custom_call.1} parent=5 // pred_fallthru
        _
      %p156 = scmp.le.s32.totalorder 1, %s15
      %p157 = scmp.lt.s32.totalorder %s15, 3
      %p158 = pnand %p156, %p157
      %p159 = pneg %p158
      // Predicated region
      $region29: #{tpu_custom_call.1} parent=5 // pred_check
        _
      $region30: #{tpu_custom_call.1} parent=5 // pred_check_branch
        %161 = sbr.rel (%p158) target = $region32
      $region31: #{tpu_custom_call.1} parent=5 // pred_region
        %s162 = ssub.s32 %s15, 1
        %s163 = sand.u32 %s28, 1
        %s164 = scalar_lea.sflag [#allocation3], %s163
        %s165 = sand.u32 %s28, 1
        %s166 = smul.addr %s165, 256
        %s167 = scalar_lea.vmem [#allocation2], %s166
        // Predicated region
        $region33: #{tpu_custom_call.1} parent=31 // pred_check
          %p168 = pneg %p41
        $region34: #{tpu_custom_call.1} parent=31 // pred_check_branch
          %170 = sbr.rel (%p168) target = $region36
        $region35: #{tpu_custom_call.1} parent=31 // pred_region
          %172 = dma.done %s164, 4096
        $region36: #{tpu_custom_call.1} parent=31 // pred_fallthru
          _
        %s173 = sand.u32 %s28, 1
        %s174 = scalar_lea.sflag [#allocation3], %s173
        %s175 = sand.u32 %s28, 1
        %s176 = smul.addr %s175, 256
        %s177 = scalar_lea.vmem [#allocation2], %s176
        %p178 = pneg %p41
        %p179 = pneg %p38
        %p180 = pneg %p62
        %p181 = pneg %p59
        %p182 = pneg %p83
        %p183 = pneg %p80
        %p184 = pneg %p109
        %p185 = pneg %p106
        %s186 = sand.u32 %s96, 1
        %s187 = scalar_lea.sflag [#allocation4], %s186
        %s188 = sand.u32 %s96, 1
        %s189 = smul.addr %s188, 256
        %s190 = scalar_lea.vmem [#allocation5], %s189
        %v191 = vld [vmem:[%s167] sm:$0xff]
        %v192 = vld [vmem:[%s167 + $0x8] sm:$0xff]
        %v193 = vld [vmem:[%s167 + $0x10] sm:$0xff]
        %v194 = vld [vmem:[%s167 + $0x18] sm:$0xff]
        %v195 = vld [vmem:[%s167 + $0x20] sm:$0xff]
        %v196 = vld [vmem:[%s167 + $0x28] sm:$0xff]
        %v197 = vld [vmem:[%s167 + $0x30] sm:$0xff]
        %v198 = vld [vmem:[%s167 + $0x38] sm:$0xff]
        %v199 = vld [vmem:[%s167 + $0x40] sm:$0xff]
        %v200 = vld [vmem:[%s167 + $0x48] sm:$0xff]
        %v201 = vld [vmem:[%s167 + $0x50] sm:$0xff]
        %v202 = vld [vmem:[%s167 + $0x58] sm:$0xff]
        %v203 = vld [vmem:[%s167 + $0x60] sm:$0xff]
        %v204 = vld [vmem:[%s167 + $0x68] sm:$0xff]
        %v205 = vld [vmem:[%s167 + $0x70] sm:$0xff]
        %v206 = vld [vmem:[%s167 + $0x78] sm:$0xff]
        %v207 = vld [vmem:[%s167 + $0x80] sm:$0xff]
        %v208 = vld [vmem:[%s167 + $0x88] sm:$0xff]
        %v209 = vld [vmem:[%s167 + $0x90] sm:$0xff]
        %v210 = vld [vmem:[%s167 + $0x98] sm:$0xff]
        %v211 = vld [vmem:[%s167 + $0xa0] sm:$0xff]
        %v212 = vld [vmem:[%s167 + $0xa8] sm:$0xff]
        %v213 = vld [vmem:[%s167 + $0xb0] sm:$0xff]
        %v214 = vld [vmem:[%s167 + $0xb8] sm:$0xff]
        %v215 = vld [vmem:[%s167 + $0xc0] sm:$0xff]
        %v216 = vld [vmem:[%s167 + $0xc8] sm:$0xff]
        %v217 = vld [vmem:[%s167 + $0xd0] sm:$0xff]
        %v218 = vld [vmem:[%s167 + $0xd8] sm:$0xff]
        %v219 = vld [vmem:[%s167 + $0xe0] sm:$0xff]
        %v220 = vld [vmem:[%s167 + $0xe8] sm:$0xff]
        %v221 = vld [vmem:[%s167 + $0xf0] sm:$0xff]
        %v222 = vld [vmem:[%s167 + $0xf8] sm:$0xff]
        %v223 = vadd.f32 %v191, %v192
        %v224 = vadd.f32 %v223, %v193
        %vm225 = vcmask 130048
        %v226 = vsel %vm225, %v194, 0.0
        %v227 = vadd.f32 %v224, %v226
        %228 = vadd.xlane.f32.xlu0 %v227
        %v229 = vpop.xlane.xlu0 %228
        %v230 = vadd.f32 %v195, %v196
        %v231 = vadd.f32 %v230, %v197
        %v232 = vsel %vm225, %v198, 0.0
        %v233 = vadd.f32 %v231, %v232
        %234 = vadd.xlane.f32.xlu0 %v233
        %v235 = vpop.xlane.xlu0 %234
        %v236 = vadd.f32 %v199, %v200
        %v237 = vadd.f32 %v236, %v201
        %v238 = vsel %vm225, %v202, 0.0
        %v239 = vadd.f32 %v237, %v238
        %240 = vadd.xlane.f32.xlu0 %v239
        %v241 = vpop.xlane.xlu0 %240
        %v242 = vadd.f32 %v203, %v204
        %v243 = vadd.f32 %v242, %v205
        %v244 = vsel %vm225, %v206, 0.0
        %v245 = vadd.f32 %v243, %v244
        %246 = vadd.xlane.f32.xlu0 %v245
        %v247 = vpop.xlane.xlu0 %246
        %v248 = vadd.f32 %v207, %v208
        %v249 = vadd.f32 %v248, %v209
        %v250 = vsel %vm225, %v210, 0.0
        %v251 = vadd.f32 %v249, %v250
        %252 = vadd.xlane.f32.xlu0 %v251
        %v253 = vpop.xlane.xlu0 %252
        %v254 = vadd.f32 %v211, %v212
        %v255 = vadd.f32 %v254, %v213
        %v256 = vsel %vm225, %v214, 0.0
        %v257 = vadd.f32 %v255, %v256
        %258 = vadd.xlane.f32.xlu0 %v257
        %v259 = vpop.xlane.xlu0 %258
        %v260 = vadd.f32 %v215, %v216
        %v261 = vadd.f32 %v260, %v217
        %v262 = vsel %vm225, %v218, 0.0
        %v263 = vadd.f32 %v261, %v262
        %264 = vadd.xlane.f32.xlu0 %v263
        %v265 = vpop.xlane.xlu0 %264
        %v266 = vadd.f32 %v219, %v220
        %v267 = vadd.f32 %v266, %v221
        %v268 = vsel %vm225, %v222, 0.0
        %v269 = vadd.f32 %v267, %v268
        %270 = vadd.xlane.f32.xlu0 %v269
        %v271 = vpop.xlane.xlu0 %270
        %v272 = vmul.f32 %v229, 0.0025
        %v273 = vmul.f32 %v235, 0.0025
        %v274 = vmul.f32 %v241, 0.0025
        %v275 = vmul.f32 %v247, 0.0025
        %v276 = vmul.f32 %v253, 0.0025
        %v277 = vmul.f32 %v259, 0.0025
        %v278 = vmul.f32 %v265, 0.0025
        %v279 = vmul.f32 %v271, 0.0025
        %v280 = vld [vmem:[%s1] sm:$0xff]
        %v281 = vld [vmem:[%s1 + $0x8] sm:$0xff]
        %v282 = vld [vmem:[%s1 + $0x10] sm:$0xff]
        %v283 = vld [vmem:[%s1 + $0x18] sm:$0xff]
        %v284 = vld [vmem:[%s1 + $0x20] sm:$0xff]
        %v285 = vld [vmem:[%s1 + $0x28] sm:$0xff]
        %v286 = vld [vmem:[%s1 + $0x30] sm:$0xff]
        %v287 = vld [vmem:[%s1 + $0x38] sm:$0xff]
        %v288 = vmul.f32 %v280, %v272
        %v289 = vmul.f32 %v281, %v273
        %v290 = vmul.f32 %v282, %v274
        %v291 = vmul.f32 %v283, %v275
        %v292 = vmul.f32 %v284, %v276
        %v293 = vmul.f32 %v285, %v277
        %v294 = vmul.f32 %v286, %v278
        %v295 = vmul.f32 %v287, %v279
        %vm296 = vcmask 31744
        %v297 = vsel %vm296, %v288, 0.0
        %v298 = vsel %vm296, %v289, 0.0
        %v299 = vadd.f32 %v297, %v298
        %v300 = vsel %vm296, %v290, 0.0
        %v301 = vadd.f32 %v299, %v300
        %v302 = vsel %vm296, %v291, 0.0
        %v303 = vadd.f32 %v301, %v302
        %v304 = vsel %vm296, %v292, 0.0
        %v305 = vadd.f32 %v303, %v304
        %v306 = vsel %vm296, %v293, 0.0
        %v307 = vadd.f32 %v305, %v306
        %v308 = vsel %vm296, %v294, 0.0
        %v309 = vadd.f32 %v307, %v308
        %v310 = vsel %vm296, %v295, 0.0
        %v311 = vadd.f32 %v309, %v310
        %v312 = vrot.slane %v311, 4
        %v313 = vadd.f32 %v311, %v312
        %v314 = vrot.slane %v313, 2
        %v315 = vadd.f32 %v313, %v314
        %v316 = vrot.slane %v315, 1
        %v317 = vadd.f32 %v315, %v316
        %v318 = vmax.f32 %v317, 0.0
        %v319 = vld [vmem:[%s2] sm:$0xff]
        %v320 = vld [vmem:[%s2 + $0x8] sm:$0xff]
        %v321 = vld [vmem:[%s2 + $0x10] sm:$0xff]
        %v322 = vld [vmem:[%s2 + $0x18] sm:$0xff]
        %v323 = vld [vmem:[%s2 + $0x20] sm:$0xff]
        %v324 = vld [vmem:[%s2 + $0x28] sm:$0xff]
        %v325 = vld [vmem:[%s2 + $0x30] sm:$0xff]
        %v326 = vld [vmem:[%s2 + $0x38] sm:$0xff]
        %v327 = vmul.f32 %v319, %v318
        %v328 = vmul.f32 %v320, %v318
        %v329 = vmul.f32 %v321, %v318
        %v330 = vmul.f32 %v322, %v318
        %v331 = vmul.f32 %v323, %v318
        %v332 = vmul.f32 %v324, %v318
        %v333 = vmul.f32 %v325, %v318
        %v334 = vmul.f32 %v326, %v318
        %v335 = vsel %vm296, %v327, 0.0
        %336 = vadd.xlane.f32.xlu0 %v335
        %v337 = vpop.xlane.xlu0 %336
        %v338 = vsel %vm296, %v328, 0.0
        %339 = vadd.xlane.f32.xlu0 %v338
        %v340 = vpop.xlane.xlu0 %339
        %v341 = vsel %vm296, %v329, 0.0
        %342 = vadd.xlane.f32.xlu0 %v341
        %v343 = vpop.xlane.xlu0 %342
        %v344 = vsel %vm296, %v330, 0.0
        %345 = vadd.xlane.f32.xlu0 %v344
        %v346 = vpop.xlane.xlu0 %345
        %v347 = vsel %vm296, %v331, 0.0
        %348 = vadd.xlane.f32.xlu0 %v347
        %v349 = vpop.xlane.xlu0 %348
        %v350 = vsel %vm296, %v332, 0.0
        %351 = vadd.xlane.f32.xlu0 %v350
        %v352 = vpop.xlane.xlu0 %351
        %v353 = vsel %vm296, %v333, 0.0
        %354 = vadd.xlane.f32.xlu0 %v353
        %v355 = vpop.xlane.xlu0 %354
        %v356 = vsel %vm296, %v334, 0.0
        %357 = vadd.xlane.f32.xlu0 %v356
        %v358 = vpop.xlane.xlu0 %357
        %v359 = vxor.u32 %v337, 2147483648
        %v360 = vxor.u32 %v340, 2147483648
        %v361 = vxor.u32 %v343, 2147483648
        %v362 = vxor.u32 %v346, 2147483648
        %v363 = vxor.u32 %v349, 2147483648
        %v364 = vxor.u32 %v352, 2147483648
        %v365 = vxor.u32 %v355, 2147483648
        %v366 = vxor.u32 %v358, 2147483648
        %v367 = vmul.f32 %v359, 1.442695
        %v368 = vpow.pop %v367
        %v369 = vmul.f32 %v360, 1.442695
        %v370 = vpow.pop %v369
        %v371 = vmul.f32 %v361, 1.442695
        %v372 = vpow.pop %v371
        %v373 = vmul.f32 %v362, 1.442695
        %v374 = vpow.pop %v373
        %v375 = vmul.f32 %v363, 1.442695
        %v376 = vpow.pop %v375
        %v377 = vmul.f32 %v364, 1.442695
        %v378 = vpow.pop %v377
        %v379 = vmul.f32 %v365, 1.442695
        %v380 = vpow.pop %v379
        %v381 = vmul.f32 %v366, 1.442695
        %v382 = vpow.pop %v381
        %v383 = vadd.f32 %v368, 1.0
        %v384 = vadd.f32 %v370, 1.0
        %v385 = vadd.f32 %v372, 1.0
        %v386 = vadd.f32 %v374, 1.0
        %v387 = vadd.f32 %v376, 1.0
        %v388 = vadd.f32 %v378, 1.0
        %v389 = vadd.f32 %v380, 1.0
        %v390 = vadd.f32 %v382, 1.0
        %v391 = vrcp.pop %v383
        %v392 = vmul.f32 %v383, %v391
        %v393 = vsub.f32 1.0, %v392
        %v394 = vmul.f32 %v391, %v393
        %v395 = vadd.f32 %v391, %v394
        %vm396 = vweird.f32 %v383
        %vm397 = vweird.f32 %v391
        %vm398 = vmor %vm396, %vm397
        %v399 = vsel %vm398, %v391, %v395
        %v400 = vand.u32 2147483647, %v383
        %vm401 = vcmp.eq.f32.partialorder %v400, 8.507059e+37
        %v402 = vand.u32 %v383, 2147483648
        %v403 = vor.u32 1.1754944e-38, %v402
        %v404 = vsel %vm401, %v403, %v399
        %v405 = vmul.f32 1.0, %v404
        %v406 = vrcp.pop %v384
        %v407 = vmul.f32 %v384, %v406
        %v408 = vsub.f32 1.0, %v407
        %v409 = vmul.f32 %v406, %v408
        %v410 = vadd.f32 %v406, %v409
        %vm411 = vweird.f32 %v384
        %vm412 = vweird.f32 %v406
        %vm413 = vmor %vm411, %vm412
        %v414 = vsel %vm413, %v406, %v410
        %v415 = vand.u32 2147483647, %v384
        %vm416 = vcmp.eq.f32.partialorder %v415, 8.507059e+37
        %v417 = vand.u32 %v384, 2147483648
        %v418 = vor.u32 1.1754944e-38, %v417
        %v419 = vsel %vm416, %v418, %v414
        %v420 = vmul.f32 1.0, %v419
        %v421 = vrcp.pop %v385
        %v422 = vmul.f32 %v385, %v421
        %v423 = vsub.f32 1.0, %v422
        %v424 = vmul.f32 %v421, %v423
        %v425 = vadd.f32 %v421, %v424
        %vm426 = vweird.f32 %v385
        %vm427 = vweird.f32 %v421
        %vm428 = vmor %vm426, %vm427
        %v429 = vsel %vm428, %v421, %v425
        %v430 = vand.u32 2147483647, %v385
        %vm431 = vcmp.eq.f32.partialorder %v430, 8.507059e+37
        %v432 = vand.u32 %v385, 2147483648
        %v433 = vor.u32 1.1754944e-38, %v432
        %v434 = vsel %vm431, %v433, %v429
        %v435 = vmul.f32 1.0, %v434
        %v436 = vrcp.pop %v386
        %v437 = vmul.f32 %v386, %v436
        %v438 = vsub.f32 1.0, %v437
        %v439 = vmul.f32 %v436, %v438
        %v440 = vadd.f32 %v436, %v439
        %vm441 = vweird.f32 %v386
        %vm442 = vweird.f32 %v436
        %vm443 = vmor %vm441, %vm442
        %v444 = vsel %vm443, %v436, %v440
        %v445 = vand.u32 2147483647, %v386
        %vm446 = vcmp.eq.f32.partialorder %v445, 8.507059e+37
        %v447 = vand.u32 %v386, 2147483648
        %v448 = vor.u32 1.1754944e-38, %v447
        %v449 = vsel %vm446, %v448, %v444
        %v450 = vmul.f32 1.0, %v449
        %v451 = vrcp.pop %v387
        %v452 = vmul.f32 %v387, %v451
        %v453 = vsub.f32 1.0, %v452
        %v454 = vmul.f32 %v451, %v453
        %v455 = vadd.f32 %v451, %v454
        %vm456 = vweird.f32 %v387
        %vm457 = vweird.f32 %v451
        %vm458 = vmor %vm456, %vm457
        %v459 = vsel %vm458, %v451, %v455
        %v460 = vand.u32 2147483647, %v387
        %vm461 = vcmp.eq.f32.partialorder %v460, 8.507059e+37
        %v462 = vand.u32 %v387, 2147483648
        %v463 = vor.u32 1.1754944e-38, %v462
        %v464 = vsel %vm461, %v463, %v459
        %v465 = vmul.f32 1.0, %v464
        %v466 = vrcp.pop %v388
        %v467 = vmul.f32 %v388, %v466
        %v468 = vsub.f32 1.0, %v467
        %v469 = vmul.f32 %v466, %v468
        %v470 = vadd.f32 %v466, %v469
        %vm471 = vweird.f32 %v388
        %vm472 = vweird.f32 %v466
        %vm473 = vmor %vm471, %vm472
        %v474 = vsel %vm473, %v466, %v470
        %v475 = vand.u32 2147483647, %v388
        %vm476 = vcmp.eq.f32.partialorder %v475, 8.507059e+37
        %v477 = vand.u32 %v388, 2147483648
        %v478 = vor.u32 1.1754944e-38, %v477
        %v479 = vsel %vm476, %v478, %v474
        %v480 = vmul.f32 1.0, %v479
        %v481 = vrcp.pop %v389
        %v482 = vmul.f32 %v389, %v481
        %v483 = vsub.f32 1.0, %v482
        %v484 = vmul.f32 %v481, %v483
        %v485 = vadd.f32 %v481, %v484
        %vm486 = vweird.f32 %v389
        %vm487 = vweird.f32 %v481
        %vm488 = vmor %vm486, %vm487
        %v489 = vsel %vm488, %v481, %v485
        %v490 = vand.u32 2147483647, %v389
        %vm491 = vcmp.eq.f32.partialorder %v490, 8.507059e+37
        %v492 = vand.u32 %v389, 2147483648
        %v493 = vor.u32 1.1754944e-38, %v492
        %v494 = vsel %vm491, %v493, %v489
        %v495 = vmul.f32 1.0, %v494
        %v496 = vrcp.pop %v390
        %v497 = vmul.f32 %v390, %v496
        %v498 = vsub.f32 1.0, %v497
        %v499 = vmul.f32 %v496, %v498
        %v500 = vadd.f32 %v496, %v499
        %vm501 = vweird.f32 %v390
        %vm502 = vweird.f32 %v496
        %vm503 = vmor %vm501, %vm502
        %v504 = vsel %vm503, %v496, %v500
        %v505 = vand.u32 2147483647, %v390
        %vm506 = vcmp.eq.f32.partialorder %v505, 8.507059e+37
        %v507 = vand.u32 %v390, 2147483648
        %v508 = vor.u32 1.1754944e-38, %v507
        %v509 = vsel %vm506, %v508, %v504
        %v510 = vmul.f32 1.0, %v509
        %v511 = vmul.f32 %v191, %v405
        %v512 = vmul.f32 %v192, %v405
        %v513 = vmul.f32 %v193, %v405
        %v514 = vmul.f32 %v194, %v405
        %v515 = vmul.f32 %v195, %v420
        %v516 = vmul.f32 %v196, %v420
        %v517 = vmul.f32 %v197, %v420
        %v518 = vmul.f32 %v198, %v420
        %v519 = vmul.f32 %v199, %v435
        %v520 = vmul.f32 %v200, %v435
        %v521 = vmul.f32 %v201, %v435
        %v522 = vmul.f32 %v202, %v435
        %v523 = vmul.f32 %v203, %v450
        %v524 = vmul.f32 %v204, %v450
        %v525 = vmul.f32 %v205, %v450
        %v526 = vmul.f32 %v206, %v450
        %v527 = vmul.f32 %v207, %v465
        %v528 = vmul.f32 %v208, %v465
        %v529 = vmul.f32 %v209, %v465
        %v530 = vmul.f32 %v210, %v465
        %v531 = vmul.f32 %v211, %v480
        %v532 = vmul.f32 %v212, %v480
        %v533 = vmul.f32 %v213, %v480
        %v534 = vmul.f32 %v214, %v480
        %v535 = vmul.f32 %v215, %v495
        %v536 = vmul.f32 %v216, %v495
        %v537 = vmul.f32 %v217, %v495
        %v538 = vmul.f32 %v218, %v495
        %v539 = vmul.f32 %v219, %v510
        %v540 = vmul.f32 %v220, %v510
        %v541 = vmul.f32 %v221, %v510
        %v542 = vmul.f32 %v222, %v510
        %543 = vst [vmem:[%s190] sm:$0xff] %v511
        %544 = vst [vmem:[%s190 + $0x8] sm:$0xff] %v512
        %545 = vst [vmem:[%s190 + $0x10] sm:$0xff] %v513
        %546 = vst.msk [vmem:[%s190 + $0x18] sm:$0xff] %vm225, %v514
        %547 = vst [vmem:[%s190 + $0x20] sm:$0xff] %v515
        %548 = vst [vmem:[%s190 + $0x28] sm:$0xff] %v516
        %549 = vst [vmem:[%s190 + $0x30] sm:$0xff] %v517
        %550 = vst.msk [vmem:[%s190 + $0x38] sm:$0xff] %vm225, %v518
        %551 = vst [vmem:[%s190 + $0x40] sm:$0xff] %v519
        %552 = vst [vmem:[%s190 + $0x48] sm:$0xff] %v520
        %553 = vst [vmem:[%s190 + $0x50] sm:$0xff] %v521
        %554 = vst.msk [vmem:[%s190 + $0x58] sm:$0xff] %vm225, %v522
        %555 = vst [vmem:[%s190 + $0x60] sm:$0xff] %v523
        %556 = vst [vmem:[%s190 + $0x68] sm:$0xff] %v524
        %557 = vst [vmem:[%s190 + $0x70] sm:$0xff] %v525
        %558 = vst.msk [vmem:[%s190 + $0x78] sm:$0xff] %vm225, %v526
        %559 = vst [vmem:[%s190 + $0x80] sm:$0xff] %v527
        %560 = vst [vmem:[%s190 + $0x88] sm:$0xff] %v528
        %561 = vst [vmem:[%s190 + $0x90] sm:$0xff] %v529
        %562 = vst.msk [vmem:[%s190 + $0x98] sm:$0xff] %vm225, %v530
        %563 = vst [vmem:[%s190 + $0xa0] sm:$0xff] %v531
        %564 = vst [vmem:[%s190 + $0xa8] sm:$0xff] %v532
        %565 = vst [vmem:[%s190 + $0xb0] sm:$0xff] %v533
        %566 = vst.msk [vmem:[%s190 + $0xb8] sm:$0xff] %vm225, %v534
        %567 = vst [vmem:[%s190 + $0xc0] sm:$0xff] %v535
        %568 = vst [vmem:[%s190 + $0xc8] sm:$0xff] %v536
        %569 = vst [vmem:[%s190 + $0xd0] sm:$0xff] %v537
        %570 = vst.msk [vmem:[%s190 + $0xd8] sm:$0xff] %vm225, %v538
        %571 = vst [vmem:[%s190 + $0xe0] sm:$0xff] %v539
        %572 = vst [vmem:[%s190 + $0xe8] sm:$0xff] %v540
        %573 = vst [vmem:[%s190 + $0xf0] sm:$0xff] %v541
        %574 = vst.msk [vmem:[%s190 + $0xf8] sm:$0xff] %vm225, %v542
        %s575 = sand.u32 %s96, 1
        %s576 = scalar_lea.sflag [#allocation4], %s575
        %s577 = sand.u32 %s96, 1
        %s578 = smul.addr %s577, 256
        %s579 = scalar_lea.vmem [#allocation5], %s578
        // Predicated region
        $region37: #{tpu_custom_call.1} parent=31 // pred_check
          %p580 = pneg %p106
        $region38: #{tpu_custom_call.1} parent=31 // pred_check_branch
          %582 = sbr.rel (%p580) target = $region40
        $region39: #{tpu_custom_call.1} parent=31 // pred_region
          %584 = vsyncadd %s576, 0
          %s585 = smul.addr %s20, 32
          %s586 = smul.addr %s585, 8
          %s587 = scalar_lea.hbm %s3, %s586
          %s588 = sshll.u32 %s579, 4
          %s589 = int_to_ptr.vmem [resolvable:$true] %s588
          %s590 = sshll.u32 %s587, 4
          %s591 = int_to_ptr.hbm [resolvable:$true] %s590
          %596 = dma.vmem_to_hbm [thread:$0]  %s589, 4096, %s591, %s576, 512, 512, 32
        $region40: #{tpu_custom_call.1} parent=31 // pred_fallthru
          _
      $region32: #{tpu_custom_call.1} parent=5 // pred_fallthru
        _
      %p597 = scmp.le.s32.totalorder 2, %s15
      // Predicated region
      $region41: #{tpu_custom_call.1} parent=5 // pred_check
        %p598 = pneg %p597
      $region42: #{tpu_custom_call.1} parent=5 // pred_check_branch
        %600 = sbr.rel (%p598) target = $region44
      $region43: #{tpu_custom_call.1} parent=5 // pred_region
        %s601 = ssub.s32 %s15, 2
        // Predicated region
        $region45: #{tpu_custom_call.1} parent=43 // pred_check
          %p602 = pneg %p112
        $region46: #{tpu_custom_call.1} parent=43 // pred_check_branch
          %604 = sbr.rel (%p602) target = $region48
        $region47: #{tpu_custom_call.1} parent=43 // pred_region
          %s605 = sand.u32 %s97, 1
          %s606 = scalar_lea.sflag [#allocation4], %s605
          %s607 = sand.u32 %s97, 1
          %s608 = smul.addr %s607, 256
          %s609 = scalar_lea.vmem [#allocation5], %s608
          %611 = dma.done %s606, 4096
        $region48: #{tpu_custom_call.1} parent=43 // pred_fallthru
          _
      $region44: #{tpu_custom_call.1} parent=5 // pred_fallthru
        _
    $region6: #{tpu_custom_call.1} parent=1 // loop_footer
      %s19 = sadd.s32 1, %s15
    $region7: #{tpu_custom_call.1} parent=1 // loop_footer_branch
      %14 = sbr.rel target = $region3
    $region8: #{tpu_custom_call.1} parent=1 // loop_exit
      _
    %612 = vsyncpa [#allocation3], 1
    %s613 = scalar_lea.sflag [#allocation3], 1
    %614 = vsyncpa %s613, 1
    %615 = vsyncpa [#allocation4], 1
    %s616 = scalar_lea.sflag [#allocation4], 1
    %617 = vsyncpa %s616, 1

</llo_original>
